<compile_context>
chip_gen: v7x
topology: tpu7x:2x2x1
jax: 0.10.0
libtpu: 0.0.40
codegen_flags: <defaults>
</compile_context>

<pallas_src>
import functools

import jax
import jax.numpy as jnp
from jax.experimental import pallas as pl
from jax.experimental.pallas import tpu as pltpu


# ----------------------------------------------------------------------------- kernel
def _gauss_clamp_kernel(x_ref, o_ref, *, mean, neg_inv_two_var, cmin, cmax):
    x = x_ref[...].astype(jnp.float32)
    d = x - mean
    g = jnp.exp(d * d * neg_inv_two_var)          # 2 VPU muls + 1 EUP exp
    o_ref[...] = jnp.clip(g, cmin, cmax).astype(o_ref.dtype)


# ----------------------------------------------------------------------------- helpers
def _cdiv(a, b):
    return -(-a // b)


def _round_up(a, b):
    return _cdiv(a, b) * b


def _round_down(a, b):
    return (a // b) * b


def _tile_budget_bytes():
    """Per-buffer VMEM budget, picked by TPU generation (safe under default scoped VMEM)."""
    try:
        kind = jax.devices()[0].device_kind.lower()
    except Exception:  # pragma: no cover - be robust off-TPU / in interpret mode
        kind = ""
    if "v5" in kind:                  # v5e: 16 MiB default scoped VMEM -> 4 x 2 MiB
        return 2 << 20
    if "v6" in kind or "v7" in kind or "7x" in kind:
        return 4 << 20                # 32 MiB default scoped VMEM -> 4 x 4 MiB
    return 2 << 20                    # unknown backend: conservative


def _choose_cols(n):
    """Largest lane-dense width (multiple of 128) that divides n exactly (no padding)."""
    for cols in (2048, 1024, 512, 256, 128):
        if n % cols == 0:
            return cols
    return None


def _choose_tile_rows(rows_total, cols, itemsize, budget_bytes):
    """Pick tile rows (multiple of 8, or == rows_total) and grid step count."""
    tr_budget = max(8, _round_down(budget_bytes // (cols * itemsize), 8))
    small = rows_total * cols * itemsize <= (1 << 20)
    if rows_total <= 8 or (rows_total <= tr_budget and small):
        # Single block; block shape == full array dims is always legal.
        return rows_total, 1
    # At least 2 steps (feeds both v7x TCs, enables double-buffered DMA).
    tr = min(tr_budget, _round_up(_cdiv(rows_total, 2), 8))
    steps = _cdiv(rows_total, tr)
    # Prefer an even step count for a balanced megacore split on v7x.
    if steps > 1 and steps % 2 == 1:
        tr = _round_up(_cdiv(rows_total, steps + 1), 8)
        steps = _cdiv(rows_total, tr)
    return tr, steps


def _run_slab(x2d, tr, steps, kernel, cost):
    rows, cols = x2d.shape
    return pl.pallas_call(
        kernel,
        out_shape=jax.ShapeDtypeStruct((rows, cols), x2d.dtype),
        grid=(steps,),
        in_specs=[pl.BlockSpec((tr, cols), lambda i: (i, 0))],
        out_specs=pl.BlockSpec((tr, cols), lambda i: (i, 0)),
        compiler_params=pltpu.CompilerParams(
            dimension_semantics=("parallel",),   # shard row-tiles across TCs on v7x
        ),
        cost_estimate=cost,
    )(x2d)


# ----------------------------------------------------------------------------- wrapper
@functools.partial(jax.jit, static_argnames=("mean", "std", "clamp_min", "clamp_max"))
def my_activation_function(x, mean=0.0, std=1.0, clamp_min=0.1, clamp_max=0.9):
    """Elementwise gaussian-bump activation with clamping (Pallas TPU kernel)."""
    orig_shape = x.shape
    dtype = x.dtype
    n = x.size
    itemsize = jnp.dtype(dtype).itemsize

    kernel = functools.partial(
        _gauss_clamp_kernel,
        mean=float(mean),
        neg_inv_two_var=-1.0 / (2.0 * float(std) * float(std)),
        cmin=float(clamp_min),
        cmax=float(clamp_max),
    )
    budget = _tile_budget_bytes()
    cost = pl.CostEstimate(
        flops=3 * n, transcendentals=n, bytes_accessed=2 * n * itemsize
    )

    cols = _choose_cols(n)
    if cols is not None:
        # ---- fast path: exact lane-dense reshape, zero extra HBM traffic ----
        rows = n // cols
        tr, steps = _choose_tile_rows(rows, cols, itemsize, budget)
        out2d = _run_slab(x.reshape(rows, cols), tr, steps, kernel, cost)
        return out2d.reshape(orig_shape)

    # ---- rare fallback: n not a multiple of 128 -> pad tail, run, slice ----
    # TODO(synk): could split bulk/tail into two pallas_calls to avoid the pad copy.
    cols = 128
    rows = _cdiv(n, cols)
    padded = rows * cols
    x_flat = jnp.pad(x.reshape(-1), (0, padded - n))
    tr, steps = _choose_tile_rows(rows, cols, itemsize, budget)
    out2d = _run_slab(x_flat.reshape(rows, cols), tr, steps, kernel, cost)
    return out2d.reshape(-1)[:n].reshape(orig_shape)


# ----------------------------------------------------------------------------- test
if __name__ == "__main__":
    key = jax.random.PRNGKey(0)
    # NCHW-style input, consistent with a typical conv-activation usage.
    x = jax.random.normal(key, (2, 4, 16, 16), dtype=jnp.float32)

    out = my_activation_function(x, mean=0.0, std=1.0, clamp_min=0.1, clamp_max=0.9)
    out = jax.block_until_ready(out)

    # Reference check in plain JAX (same math as the PyTorch module).
    ref = jnp.clip(jnp.exp(-((x - 0.0) ** 2) / (2.0 * 1.0 ** 2)), 0.1, 0.9)
    assert out.shape == x.shape and out.dtype == x.dtype
    assert jnp.allclose(out, ref, atol=1e-6, rtol=1e-6)

    print("KERNEL_OK")
</pallas_src>

<mosaic_0001>
module attributes {stable_mosaic.version = 11 : i64} {
  func.func @_gauss_clamp_kernel(%arg0: i32, %arg1: memref<1x2048xf32, #tpu.memory_space<vmem>>, %arg2: memref<1x2048xf32, #tpu.memory_space<vmem>>) attributes {dimension_semantics = [#tpu.dimension_semantics<parallel>], iteration_bounds = array<i64: 1>, scalar_prefetch = 0 : i64, scratch_operands = 0 : i64, tpu.core_type = #tpu.core_type<tc>, window_params = [{transform_indices = @transform_0, window_bounds = array<i64: 1, 2048>}, {transform_indices = @transform_1, window_bounds = array<i64: 1, 2048>}]} {
    %c0 = arith.constant 0 : index
    %c0_0 = arith.constant 0 : index
    %0 = vector.load %arg1[%c0, %c0_0] : memref<1x2048xf32, #tpu.memory_space<vmem>>, vector<1x2048xf32>
    %cst = arith.constant 0.000000e+00 : f32
    %1 = vector.broadcast %cst : f32 to vector<1x2048xf32>
    %2 = arith.subf %0, %1 : vector<1x2048xf32>
    %3 = arith.mulf %2, %2 : vector<1x2048xf32>
    %cst_1 = arith.constant -5.000000e-01 : f32
    %4 = vector.broadcast %cst_1 : f32 to vector<1x2048xf32>
    %5 = arith.mulf %3, %4 : vector<1x2048xf32>
    %6 = math.exp %5 : vector<1x2048xf32>
    %cst_2 = arith.constant 1.000000e-01 : f32
    %cst_3 = arith.constant 0.899999976 : f32
    %7 = vector.broadcast %cst_2 : f32 to vector<1x2048xf32>
    %8 = arith.maximumf %7, %6 : vector<1x2048xf32>
    %9 = vector.broadcast %cst_3 : f32 to vector<1x2048xf32>
    %10 = arith.minimumf %9, %8 : vector<1x2048xf32>
    %c0_4 = arith.constant 0 : index
    %c0_5 = arith.constant 0 : index
    %11 = vector.load %arg2[%c0_4, %c0_5] : memref<1x2048xf32, #tpu.memory_space<vmem>>, vector<1x2048xf32>
    tpu.vector_store %arg2[%c0_4, %c0_5], %10 {strides = array<i32>} : memref<1x2048xf32, #tpu.memory_space<vmem>>, vector<1x2048xf32>,
    return
  }
  func.func @transform_0(%arg0: i32) -> (i32, i32) {
    %c0_i32 = arith.constant 0 : i32
    %c0_i32_0 = arith.constant 0 : i32
    return %arg0, %c0_i32 : i32, i32
  }
  func.func @transform_1(%arg0: i32) -> (i32, i32) {
    %c0_i32 = arith.constant 0 : i32
    %c0_i32_0 = arith.constant 0 : i32
    return %arg0, %c0_i32 : i32, i32
  }
}

</mosaic_0001>

<llo_original>
// kernel: my_activation_function.1
$region0: #{my_activation_function.1}
  #allocation0 [shape = 'u32[]', space=smem, size = 0x4, offset = 0x4, fixed_abs, tag = 'smem constant byte address 0x4 - core index']
  #allocation1 [shape = 'u32[144,128]{1,0:T(1,128)}', space=vmem, size = 0x12000, scoped, tag = 'internal scratch']
  %s0 = inlined_call_operand.vmem [shape: f32[1,2048], index: 0, kind: input, shape index: {}]
  %s1 = inlined_call_operand.vmem [shape: f32[1,2048], index: 1, kind: output, shape index: {}]
  %s2 = sld [smem:[#allocation0]]
  $region14: #{my_activation_function.1} parent=0
    _
  %s4 = ssub.s32 1, %s2
  %s5 = scalar_select 0, %s4, %s2
  // Predicated region
  $region2: #{my_activation_function.1} parent=0 // pred_check
    _
  $region3: #{my_activation_function.1} parent=0 // pred_check_branch
    %7 = sbr.rel (0) target = $region5
  $region4: #{my_activation_function.1} parent=0 // pred_region
    _
  $region5: #{my_activation_function.1} parent=0 // pred_fallthru
    _
  %v8 = vld [vmem:[%s0] sm:$0xff]
  %v9 = vld [vmem:[%s0 + $0x8] sm:$0xff]
  %v10 = vmul.f32 %v8, %v8
  %v11 = vmul.f32 %v9, %v9
  %v12 = vmul.f32 %v10, -0.5
  %v13 = vmul.f32 %v11, -0.5
  %v14 = vmul.f32 %v12, 1.442695
  %v15 = vpow.pop %v14
  %v16 = vmul.f32 %v13, 1.442695
  %v17 = vpow.pop %v16
  %v18 = vmax.f32 %v15, 0.1
  %v19 = vmax.f32 %v17, 0.1
  %v20 = vmin.f32 %v18, 0.9
  %v21 = vmin.f32 %v19, 0.9
  %22 = vst [vmem:[%s1] sm:$0xff] %v20
  %23 = vst [vmem:[%s1 + $0x8] sm:$0xff] %v21
  // Predicated region
  $region6: #{my_activation_function.1} parent=0 // pred_check
    _
  $region7: #{my_activation_function.1} parent=0 // pred_check_branch
    %25 = sbr.rel (0) target = $region9
  $region8: #{my_activation_function.1} parent=0 // pred_region
    _
  $region9: #{my_activation_function.1} parent=0 // pred_fallthru
    _
  // Predicated region
  $region10: #{my_activation_function.1} parent=0 // pred_check
    _
  $region11: #{my_activation_function.1} parent=0 // pred_check_branch
    %27 = sbr.rel (0) target = $region13
  $region12: #{my_activation_function.1} parent=0 // pred_region
    _
  $region13: #{my_activation_function.1} parent=0 // pred_fallthru
    _

</llo_original>
